<compile_context>
chip_gen: v7x
topology: tpu7x:2x2x1
jax: 0.10.0
libtpu: 0.0.40
codegen_flags: <defaults>
</compile_context>

<pallas_src>
import math
import functools

import jax
import jax.numpy as jnp
from jax.experimental import pallas as pl
from jax.experimental.pallas import tpu as pltpu


def _round_up(x, m):
    return ((x + m - 1) // m) * m


_VMEM_LIMIT = 32 * 1024 * 1024  # safe on v5e/v6e (128 MiB) and v7x (64 MiB)

_SELU_ALPHA = 1.6732632423543772
_SELU_SCALE = 1.0507009873554805


def _make_activation(name):
    # exp(z)-1 (not expm1) for guaranteed Mosaic lowering; |err| near 0 < 1e-7.
    if name == 'elu':
        return lambda z: jnp.where(z > 0, z, jnp.exp(z) - 1.0)
    if name == 'relu':
        return lambda z: jnp.maximum(z, 0.0)
    if name == 'lrelu':
        return lambda z: jnp.where(z > 0, z, 0.01 * z)
    if name == 'tanh':
        return jnp.tanh
    if name == 'sigmoid':
        return jax.nn.sigmoid
    if name == 'selu':
        return lambda z: _SELU_SCALE * jnp.where(
            z > 0, z, _SELU_ALPHA * (jnp.exp(z) - 1.0))
    # TODO(synk): 'crelu' doubles the feature width; no drop-in elementwise
    # Pallas equivalent here.
    raise ValueError(f"unsupported activation: {name}")


# ----------------------------------------------------------------------------
# Kernels
# ----------------------------------------------------------------------------
def _mlp_chain(x, w_ref, b_ref, layers, act_name):
    """(Linear -> act) x (n-1) -> Linear on packed, VMEM-resident params.

    `layers` is a static tuple of (row_offset, padded_in, padded_out).
    Matmul operands use the stored weight dtype (bf16 by default) with f32
    accumulation; bias add + activation stay in f32 vregs (v5e-safe).
    """
    act = _make_activation(act_name)
    n = len(layers)
    h = x
    for i, (off, ip, op) in enumerate(layers):
        w = w_ref[off:off + ip, :op]          # static, (8,128)-aligned slice
        h = jnp.dot(h.astype(w_ref.dtype), w,
                    preferred_element_type=jnp.float32)
        h = h + b_ref[i:i + 1, :op]           # f32 bias, post-accumulation
        if i < n - 1:
            h = act(h)
    return h


def _mlp_kernel(x_ref, w_ref, b_ref, o_ref, *, layers, act_name):
    o_ref[...] = _mlp_chain(x_ref[...], w_ref, b_ref, layers,
                            act_name).astype(o_ref.dtype)


def _actor_critic_kernel(obs_a_ref, obs_c_ref, aw_ref, ab_ref, cw_ref, cb_ref,
                         o_ref, *, a_layers, c_layers, act_name, value_lane):
    """Fused actor + critic; both heads packed into ONE lane-dense output slab.

    Action mean occupies lanes [0, num_actions); the critic value is placed in
    lane `value_lane` (== num_actions).  Both heads are zero-padded, so the
    merge below (lane-sum + select) is exact and the store stays un-masked.
    """
    mean = _mlp_chain(obs_a_ref[...], aw_ref, ab_ref, a_layers, act_name)
    val = _mlp_chain(obs_c_ref[...], cw_ref, cb_ref, c_layers, act_name)
    # critic head is exactly zero outside lane 0 -> lane-sum recovers value
    v = jnp.sum(val, axis=-1, keepdims=True)
    lane = jax.lax.broadcasted_iota(jnp.int32, mean.shape, 1)
    o_ref[...] = jnp.where(lane == value_lane, v, mean).astype(o_ref.dtype)


# ----------------------------------------------------------------------------
# pallas_call wrappers
# ----------------------------------------------------------------------------
def _batch_tiling(batch, block_b, gran):
    bp = _round_up(max(batch, 1), gran)
    tb = _round_up(min(block_b, bp), gran)
    bp = _round_up(bp, tb)
    return bp, tb


def _prepare_obs(x, in_pad, bp, dtype):
    """Pad features only to a sublane multiple (NOT 128) and rows to the batch
    grid; cast to the weight dtype (bf16 default) to halve the input HBM read."""
    b, f = x.shape
    if in_pad - f or bp - b:
        x = jnp.pad(x, ((0, bp - b), (0, in_pad - f)))
    return x.astype(dtype)


def _resident_spec(arr):
    # Constant block index across the whole batch grid: Pallas keeps the slab
    # VMEM-resident and skips the re-DMA after the first grid step.
    # (pl.Buffered(1) could drop the second buffer too, but these ~1 MB slabs
    # are nowhere near the VMEM budget, so we keep the portable default.)
    return pl.BlockSpec(arr.shape, lambda i: (0, 0))


def _mlp_forward(x, w, b, layers, act_name, block_b):
    in_pad = layers[0][1]
    out_pad = layers[-1][2]
    batch = x.shape[0]
    gran = 16 if w.dtype == jnp.bfloat16 else 8
    bp, tb = _batch_tiling(batch, block_b, gran)
    x = _prepare_obs(x, in_pad, bp, w.dtype)
    kernel = functools.partial(_mlp_kernel, layers=layers, act_name=act_name)
    out = pl.pallas_call(
        kernel,
        out_shape=jax.ShapeDtypeStruct((bp, out_pad), jnp.float32),
        grid=(bp // tb,),
        in_specs=[pl.BlockSpec((tb, in_pad), lambda i: (i, 0)),
                  _resident_spec(w), _resident_spec(b)],
        out_specs=pl.BlockSpec((tb, out_pad), lambda i: (i, 0)),
        compiler_params=pltpu.CompilerParams(
            dimension_semantics=("parallel",),
            vmem_limit_bytes=_VMEM_LIMIT),
    )(x, w, b)
    return out[:batch]


@functools.partial(jax.jit,
                   static_argnames=("layers", "act_name", "out_dim", "block_b"))
def _mlp_apply(x, w, b, layers, act_name, out_dim, block_b=1024):
    return _mlp_forward(x, w, b, layers, act_name, block_b)[:, :out_dim]


def _actor_critic_forward(obs_a, obs_c, aw, ab, cw, cb, a_layers, c_layers,
                          act_name, value_lane, block_b):
    slab = a_layers[-1][2]
    batch = obs_a.shape[0]
    gran = 16 if aw.dtype == jnp.bfloat16 else 8
    bp, tb = _batch_tiling(batch, block_b, gran)
    obs_a = _prepare_obs(obs_a, a_layers[0][1], bp, aw.dtype)
    obs_c = _prepare_obs(obs_c, c_layers[0][1], bp, cw.dtype)
    kernel = functools.partial(_actor_critic_kernel, a_layers=a_layers,
                               c_layers=c_layers, act_name=act_name,
                               value_lane=value_lane)
    # TODO(synk): on v7x, add a leading size-2 "parallel" grid axis (or
    # pl.core_map over a 2-core mesh) so actor and critic run on different
    # TensorCores when the batch grid has a single step.
    out = pl.pallas_call(
        kernel,
        out_shape=jax.ShapeDtypeStruct((bp, slab), jnp.float32),
        grid=(bp // tb,),
        in_specs=[pl.BlockSpec((tb, a_layers[0][1]), lambda i: (i, 0)),
                  pl.BlockSpec((tb, c_layers[0][1]), lambda i: (i, 0)),
                  _resident_spec(aw), _resident_spec(ab),
                  _resident_spec(cw), _resident_spec(cb)],
        out_specs=pl.BlockSpec((tb, slab), lambda i: (i, 0)),
        compiler_params=pltpu.CompilerParams(
            dimension_semantics=("parallel",),
            vmem_limit_bytes=_VMEM_LIMIT),
    )(obs_a, obs_c, aw, ab, cw, cb)
    return out[:batch]


@functools.partial(jax.jit, static_argnames=(
    "a_layers", "c_layers", "act_name", "num_actions", "block_b"))
def _actor_critic_apply(obs_a, obs_c, aw, ab, cw, cb, a_layers, c_layers,
                        act_name, num_actions, block_b=1024):
    packed = _actor_critic_forward(obs_a, obs_c, aw, ab, cw, cb,
                                   a_layers, c_layers, act_name,
                                   num_actions, block_b)
    return packed[:, :num_actions], packed[:, num_actions:num_actions + 1]


# ----------------------------------------------------------------------------
# Parameter construction (deterministic, mirrors nn.Linear default init)
# ----------------------------------------------------------------------------
def _init_packed_mlp(key, dims, out_pad_last, dtype):
    """Pack an MLP's weights into one [sum(in_pad), max_out] slab (+bias slab).

    Layer i occupies rows [off_i, off_i + in_pad_i) and lanes [0, out_pad_i);
    padding is exact zeros so padded lanes stay zero through the whole chain.
    Returns (w_packed[dtype], b_packed[f32], layers) with layers a static
    tuple of (row_offset, padded_in, padded_out).
    """
    n = len(dims) - 1
    in_dims, out_dims = list(dims[:-1]), list(dims[1:])
    in_pad = [_round_up(in_dims[0], 8)] + [_round_up(d, 128) for d in in_dims[1:]]
    out_pad = [_round_up(d, 128) for d in out_dims[:-1]] + [out_pad_last]
    max_out, rows = max(out_pad), sum(in_pad)
    w_packed = jnp.zeros((rows, max_out), jnp.float32)
    b_packed = jnp.zeros((n, max_out), jnp.float32)
    layers, off = [], 0
    keys = jax.random.split(key, n)
    for i in range(n):
        fan_in, fan_out = in_dims[i], out_dims[i]
        bound = 1.0 / math.sqrt(fan_in)
        kw, kb = jax.random.split(keys[i])
        # stored [in, out] (PyTorch's weight, transposed)
        w = jax.random.uniform(kw, (fan_in, fan_out), jnp.float32, -bound, bound)
        bvec = jax.random.uniform(kb, (fan_out,), jnp.float32, -bound, bound)
        w_packed = w_packed.at[off:off + fan_in, :fan_out].set(w)
        b_packed = b_packed.at[i, :fan_out].set(bvec)
        layers.append((off, in_pad[i], out_pad[i]))
        off += in_pad[i]
    # bf16 weights = MXU-native operands; bias stays f32 (added post-accum).
    # TODO(synk): optional fp8 (e4m3) weight path with per-channel scales for
    # the v7x inference path.
    return w_packed.astype(dtype), b_packed, tuple(layers)


# ----------------------------------------------------------------------------
# ActorCritic module (forward-pass semantics of the PyTorch reference)
# ----------------------------------------------------------------------------
class ActorCriticPallas:
    is_recurrent = False

    def __init__(self, num_obs_actor, num_obs_critic, num_actions,
                 actor_hidden_dims=(512, 256, 128),
                 critic_hidden_dims=(512, 256, 128),
                 activation='elu', init_noise_std=1.0, seed=0,
                 param_dtype=jnp.bfloat16, block_b=1024):
        _make_activation(activation)  # validate activation name early
        key = jax.random.PRNGKey(seed)
        ka, kc = jax.random.split(key)
        self.num_actions = num_actions
        self.activation = activation
        self.block_b = int(block_b)
        # One shared output slab for the fused path: mean in lanes [0, A),
        # value in lane A -> pad both heads to round_up(A + 1, 128) lanes so
        # the store is a single lane-dense, unmasked vst.
        slab = _round_up(num_actions + 1, 128)
        self.actor_w, self.actor_b, self.actor_layers = _init_packed_mlp(
            ka, [num_obs_actor, *actor_hidden_dims, num_actions], slab,
            param_dtype)
        self.critic_w, self.critic_b, self.critic_layers = _init_packed_mlp(
            kc, [num_obs_critic, *critic_hidden_dims, 1], slab, param_dtype)
        self.std = init_noise_std * jnp.ones((num_actions,), jnp.float32)
        # TODO(synk): mutable distribution state (self._mean) is not jit/vmap
        # safe; make functional (return the mean) before using act() under a
        # transformation.
        self._mean = None

    def reset(self, dones=None):
        pass

    # --- actor ---
    def act_inference(self, obs):
        return _mlp_apply(obs, self.actor_w, self.actor_b, self.actor_layers,
                          self.activation, out_dim=self.num_actions,
                          block_b=self.block_b)

    def update_distribution(self, obs):
        self._mean = self.act_inference(obs)

    def act(self, obs, key):
        self.update_distribution(obs)
        noise = jax.random.normal(key, self._mean.shape, self._mean.dtype)
        return self._mean + self.std * noise

    def get_actions_log_prob(self, actions):
        var = self.std ** 2
        logp = (-((actions - self._mean) ** 2) / (2.0 * var)
                - jnp.log(self.std) - 0.5 * jnp.log(2.0 * jnp.pi))
        return logp.sum(axis=-1)

    @property
    def action_mean(self):
        return self._mean

    @property
    def action_std(self):
        return jnp.broadcast_to(self.std, self._mean.shape)

    @property
    def entropy(self):
        ent = 0.5 + 0.5 * jnp.log(2.0 * jnp.pi) + jnp.log(self.std)
        return jnp.broadcast_to(ent, self._mean.shape).sum(axis=-1)

    # --- critic ---
    def evaluate(self, critic_obs):
        return _mlp_apply(critic_obs, self.critic_w, self.critic_b,
                          self.critic_layers, self.activation, out_dim=1,
                          block_b=self.block_b)

    # --- fused actor + critic: one pallas_call, one packed output slab ---
    def act_and_evaluate(self, obs, critic_obs):
        return _actor_critic_apply(obs, critic_obs,
                                   self.actor_w, self.actor_b,
                                   self.critic_w, self.critic_b,
                                   self.actor_layers, self.critic_layers,
                                   self.activation, self.num_actions,
                                   block_b=self.block_b)


# ----------------------------------------------------------------------------
# Pure-JAX reference (same operand dtypes / f32 accumulation as the kernel)
# ----------------------------------------------------------------------------
def _mlp_ref(x, w_packed, b_packed, layers, act_name='elu'):
    act = _make_activation(act_name)
    in_pad = layers[0][1]
    if x.shape[1] < in_pad:
        x = jnp.pad(x, ((0, 0), (0, in_pad - x.shape[1])))
    h = x
    n = len(layers)
    for i, (off, ip, op) in enumerate(layers):
        h = jnp.dot(h.astype(w_packed.dtype), w_packed[off:off + ip, :op],
                    preferred_element_type=jnp.float32) + b_packed[i, :op]
        if i < n - 1:
            h = act(h)
    return h


if __name__ == "__main__":
    B = 8
    NUM_OBS_ACTOR = 32
    NUM_OBS_CRITIC = 48
    NUM_ACTIONS = 8

    # default: bf16 MXU operands, f32 accumulation
    model = ActorCriticPallas(NUM_OBS_ACTOR, NUM_OBS_CRITIC, NUM_ACTIONS, seed=0)

    key = jax.random.PRNGKey(0)
    k_obs, k_cobs, k_act = jax.random.split(key, 3)
    obs = jax.random.normal(k_obs, (B, NUM_OBS_ACTOR), jnp.float32)
    critic_obs = jax.random.normal(k_cobs, (B, NUM_OBS_CRITIC), jnp.float32)

    # separate actor / critic kernels
    mean = jax.block_until_ready(model.act_inference(obs))
    value = jax.block_until_ready(model.evaluate(critic_obs))
    # fused actor + critic (single pallas_call, single packed 128-lane output)
    mean_f, value_f = jax.block_until_ready(model.act_and_evaluate(obs, critic_obs))

    # distribution bookkeeping (thin JAX glue)
    actions = jax.block_until_ready(model.act(obs, k_act))
    logp = jax.block_until_ready(model.get_actions_log_prob(actions))
    ent = jax.block_until_ready(model.entropy)

    # correctness vs. pure-JAX reference (same bf16-operand / f32-accum path)
    mean_ref = _mlp_ref(obs, model.actor_w, model.actor_b,
                        model.actor_layers)[:, :NUM_ACTIONS]
    value_ref = _mlp_ref(critic_obs, model.critic_w, model.critic_b,
                         model.critic_layers)[:, :1]
    assert mean.shape == (B, NUM_ACTIONS) and value.shape == (B, 1)
    assert logp.shape == (B,) and ent.shape == (B,)
    assert jnp.allclose(mean, mean_ref, atol=1e-2, rtol=1e-2)
    assert jnp.allclose(value, value_ref, atol=1e-2, rtol=1e-2)
    assert jnp.allclose(mean_f, mean_ref, atol=1e-2, rtol=1e-2)
    assert jnp.allclose(value_f, value_ref, atol=1e-2, rtol=1e-2)

    # exercise the batch grid: several tiles + batch-row padding (B=40, TB=16)
    B2 = 40
    obs2 = jax.random.normal(jax.random.PRNGKey(1), (B2, NUM_OBS_ACTOR), jnp.float32)
    mean2 = jax.block_until_ready(
        _mlp_apply(obs2, model.actor_w, model.actor_b, model.actor_layers,
                   'elu', out_dim=NUM_ACTIONS, block_b=16))
    mean2_ref = _mlp_ref(obs2, model.actor_w, model.actor_b,
                         model.actor_layers)[:, :NUM_ACTIONS]
    assert mean2.shape == (B2, NUM_ACTIONS)
    assert jnp.allclose(mean2, mean2_ref, atol=1e-2, rtol=1e-2)

    # f32 parameter path (kept for parity; bf16 is the default/fast path)
    model_f32 = ActorCriticPallas(NUM_OBS_ACTOR, NUM_OBS_CRITIC, NUM_ACTIONS,
                                  seed=0, param_dtype=jnp.float32)
    mean32 = jax.block_until_ready(model_f32.act_inference(obs))
    val32 = jax.block_until_ready(model_f32.evaluate(critic_obs))
    mean32_ref = _mlp_ref(obs, model_f32.actor_w, model_f32.actor_b,
                          model_f32.actor_layers)[:, :NUM_ACTIONS]
    val32_ref = _mlp_ref(critic_obs, model_f32.critic_w, model_f32.critic_b,
                         model_f32.critic_layers)[:, :1]
    assert jnp.allclose(mean32, mean32_ref, atol=2e-3, rtol=2e-3)
    assert jnp.allclose(val32, val32_ref, atol=2e-3, rtol=2e-3)

    print("KERNEL_OK")
</pallas_src>

<mosaic_0001>
module attributes {stable_mosaic.version = 11 : i64} {
  func.func @_mlp_kernel(%arg0: i32, %arg1: memref<16x32xbf16, #tpu.memory_space<vmem>>, %arg2: memref<928x512xbf16, #tpu.memory_space<vmem>>, %arg3: memref<4x512xf32, #tpu.memory_space<vmem>>, %arg4: memref<16x128xf32, #tpu.memory_space<vmem>>) attributes {dimension_semantics = [#tpu.dimension_semantics<parallel>], iteration_bounds = array<i64: 1>, scalar_prefetch = 0 : i64, scratch_operands = 0 : i64, tpu.core_type = #tpu.core_type<tc>, window_params = [{transform_indices = @transform_0, window_bounds = array<i64: 16, 32>}, {pipeline_mode = #tpu.pipeline_mode<synchronous>, transform_indices = @transform_1, window_bounds = array<i64: 928, 512>}, {pipeline_mode = #tpu.pipeline_mode<synchronous>, transform_indices = @transform_2, window_bounds = array<i64: 4, 512>}, {transform_indices = @transform_3, window_bounds = array<i64: 16, 128>}]} {
    %c0 = arith.constant 0 : index
    %c0_0 = arith.constant 0 : index
    %0 = vector.load %arg1[%c0, %c0_0] : memref<16x32xbf16, #tpu.memory_space<vmem>>, vector<16x32xbf16>
    %c0_1 = arith.constant 0 : index
    %c0_2 = arith.constant 0 : index
    %1 = vector.load %arg2[%c0_1, %c0_2] : memref<928x512xbf16, #tpu.memory_space<vmem>>, vector<32x512xbf16>
    %cst = arith.constant dense<0.000000e+00> : vector<16x512xf32>
    %2 = tpu.matmul %0, %1, %cst {dimension_numbers = #tpu.dot_dimension_numbers<[1], [0], [0], [1], [0, 0, 1, 1], [], []>} : vector<16x32xbf16>, vector<32x512xbf16>, vector<16x512xf32> -> vector<16x512xf32>
    %c0_3 = arith.constant 0 : index
    %c0_4 = arith.constant 0 : index
    %3 = vector.load %arg3[%c0_3, %c0_4] : memref<4x512xf32, #tpu.memory_space<vmem>>, vector<1x512xf32>
    %4 = vector.broadcast %3 : vector<1x512xf32> to vector<16x512xf32>
    %5 = arith.addf %2, %4 : vector<16x512xf32>
    %cst_5 = arith.constant 0.000000e+00 : f32
    %6 = vector.broadcast %cst_5 : f32 to vector<16x512xf32>
    %7 = arith.cmpf ogt, %5, %6 : vector<16x512xf32>
    %8 = math.exp %5 : vector<16x512xf32>
    %cst_6 = arith.constant 1.000000e+00 : f32
    %9 = vector.broadcast %cst_6 : f32 to vector<16x512xf32>
    %10 = arith.subf %8, %9 : vector<16x512xf32>
    %11 = arith.select %7, %5, %10 : vector<16x512xi1>, vector<16x512xf32>
    %c32 = arith.constant 32 : index
    %c0_7 = arith.constant 0 : index
    %12 = vector.load %arg2[%c32, %c0_7] : memref<928x512xbf16, #tpu.memory_space<vmem>>, vector<512x256xbf16>
    %13 = arith.truncf %11 : vector<16x512xf32> to vector<16x512xbf16>
    %cst_8 = arith.constant dense<0.000000e+00> : vector<16x256xf32>
    %14 = tpu.matmul %13, %12, %cst_8 {dimension_numbers = #tpu.dot_dimension_numbers<[1], [0], [0], [1], [0, 0, 1, 1], [], []>} : vector<16x512xbf16>, vector<512x256xbf16>, vector<16x256xf32> -> vector<16x256xf32>
    %c1 = arith.constant 1 : index
    %c0_9 = arith.constant 0 : index
    %15 = vector.load %arg3[%c1, %c0_9] : memref<4x512xf32, #tpu.memory_space<vmem>>, vector<1x256xf32>
    %16 = vector.broadcast %15 : vector<1x256xf32> to vector<16x256xf32>
    %17 = arith.addf %14, %16 : vector<16x256xf32>
    %cst_10 = arith.constant 0.000000e+00 : f32
    %18 = vector.broadcast %cst_10 : f32 to vector<16x256xf32>
    %19 = arith.cmpf ogt, %17, %18 : vector<16x256xf32>
    %20 = math.exp %17 : vector<16x256xf32>
    %cst_11 = arith.constant 1.000000e+00 : f32
    %21 = vector.broadcast %cst_11 : f32 to vector<16x256xf32>
    %22 = arith.subf %20, %21 : vector<16x256xf32>
    %23 = arith.select %19, %17, %22 : vector<16x256xi1>, vector<16x256xf32>
    %c544 = arith.constant 544 : index
    %c0_12 = arith.constant 0 : index
    %24 = vector.load %arg2[%c544, %c0_12] : memref<928x512xbf16, #tpu.memory_space<vmem>>, vector<256x128xbf16>
    %25 = arith.truncf %23 : vector<16x256xf32> to vector<16x256xbf16>
    %cst_13 = arith.constant dense<0.000000e+00> : vector<16x128xf32>
    %26 = tpu.matmul %25, %24, %cst_13 {dimension_numbers = #tpu.dot_dimension_numbers<[1], [0], [0], [1], [0, 0, 1, 1], [], []>} : vector<16x256xbf16>, vector<256x128xbf16>, vector<16x128xf32> -> vector<16x128xf32>
    %c2 = arith.constant 2 : index
    %c0_14 = arith.constant 0 : index
    %27 = vector.load %arg3[%c2, %c0_14] : memref<4x512xf32, #tpu.memory_space<vmem>>, vector<1x128xf32>
    %28 = vector.broadcast %27 : vector<1x128xf32> to vector<16x128xf32>
    %29 = arith.addf %26, %28 : vector<16x128xf32>
    %cst_15 = arith.constant 0.000000e+00 : f32
    %30 = vector.broadcast %cst_15 : f32 to vector<16x128xf32>
    %31 = arith.cmpf ogt, %29, %30 : vector<16x128xf32>
    %32 = math.exp %29 : vector<16x128xf32>
    %cst_16 = arith.constant 1.000000e+00 : f32
    %33 = vector.broadcast %cst_16 : f32 to vector<16x128xf32>
    %34 = arith.subf %32, %33 : vector<16x128xf32>
    %35 = arith.select %31, %29, %34 : vector<16x128xi1>, vector<16x128xf32>
    %c800 = arith.constant 800 : index
    %c0_17 = arith.constant 0 : index
    %36 = vector.load %arg2[%c800, %c0_17] : memref<928x512xbf16, #tpu.memory_space<vmem>>, vector<128x128xbf16>
    %37 = arith.truncf %35 : vector<16x128xf32> to vector<16x128xbf16>
    %cst_18 = arith.constant dense<0.000000e+00> : vector<16x128xf32>
    %38 = tpu.matmul %37, %36, %cst_18 {dimension_numbers = #tpu.dot_dimension_numbers<[1], [0], [0], [1], [0, 0, 1, 1], [], []>} : vector<16x128xbf16>, vector<128x128xbf16>, vector<16x128xf32> -> vector<16x128xf32>
    %c3 = arith.constant 3 : index
    %c0_19 = arith.constant 0 : index
    %39 = vector.load %arg3[%c3, %c0_19] : memref<4x512xf32, #tpu.memory_space<vmem>>, vector<1x128xf32>
    %40 = vector.broadcast %39 : vector<1x128xf32> to vector<16x128xf32>
    %41 = arith.addf %38, %40 : vector<16x128xf32>
    %c0_20 = arith.constant 0 : index
    %c0_21 = arith.constant 0 : index
    %42 = vector.load %arg4[%c0_20, %c0_21] : memref<16x128xf32, #tpu.memory_space<vmem>>, vector<16x128xf32>
    tpu.vector_store %arg4[%c0_20, %c0_21], %41 {strides = array<i32>} : memref<16x128xf32, #tpu.memory_space<vmem>>, vector<16x128xf32>,
    return
  }
  func.func @transform_0(%arg0: i32) -> (i32, i32) {
    %c0_i32 = arith.constant 0 : i32
    %c0_i32_0 = arith.constant 0 : i32
    return %arg0, %c0_i32 : i32, i32
  }
  func.func @transform_1(%arg0: i32) -> (i32, i32) {
    %c0_i32 = arith.constant 0 : i32
    %c0_i32_0 = arith.constant 0 : i32
    %c0_i32_1 = arith.constant 0 : i32
    return %c0_i32, %c0_i32_0 : i32, i32
  }
  func.func @transform_2(%arg0: i32) -> (i32, i32) {
    %c0_i32 = arith.constant 0 : i32
    %c0_i32_0 = arith.constant 0 : i32
    %c0_i32_1 = arith.constant 0 : i32
    return %c0_i32, %c0_i32_0 : i32, i32
  }
  func.func @transform_3(%arg0: i32) -> (i32, i32) {
    %c0_i32 = arith.constant 0 : i32
    %c0_i32_0 = arith.constant 0 : i32
    return %arg0, %c0_i32 : i32, i32
  }
}

</mosaic_0001>

<llo_original>
// kernel: _mlp_apply.1
$region0: #{_mlp_apply.1}
  #allocation0 [shape = 'u32[]', space=smem, size = 0x4, offset = 0x4, fixed_abs, tag = 'smem constant byte address 0x4 - core index']
  #allocation1 [shape = 'u32[144,128]{1,0:T(1,128)}', space=vmem, size = 0x12000, scoped, tag = 'internal scratch']
  %s0 = inlined_call_operand.vmem [shape: bf16[16,32], index: 0, kind: input, shape index: {}]
  %s1 = inlined_call_operand.hbm [shape: bf16[928,512], index: 1, kind: input, shape index: {}]
  %s2 = inlined_call_operand.vmem [shape: f32[4,512], index: 2, kind: input, shape index: {}]
  %s3 = inlined_call_operand.vmem [shape: f32[16,128], index: 3, kind: output, shape index: {}]
  %s4 = sld [smem:[#allocation0]]
  $region26: #{_mlp_apply.1} parent=0
    _
  %s6 = ssub.s32 1, %s4
  %s7 = scalar_select 0, %s6, %s4
  $region1: #{_mlp_apply.1} parent=0
    #allocation2 [shape = 'u8[950272]{0}', space=vmem, size = 0xe8000, scoped, tag = 'input window, operand 1, single buffered']
    #allocation3 [shape = 's32[1]{0}', space=sflag, size = 0x4, scoped, tag = 'scoped memory for _mlp_apply.1']
    %8 = vsyncpa [#allocation3], 0
    // Predicated region
    $region2: #{_mlp_apply.1} parent=1 // pred_check
      _
    $region3: #{_mlp_apply.1} parent=1 // pred_check_branch
      %10 = sbr.rel (0) target = $region5
    $region4: #{_mlp_apply.1} parent=1 // pred_region
      _
    $region5: #{_mlp_apply.1} parent=1 // pred_fallthru
      _
    // Predicated region
    $region6: #{_mlp_apply.1} parent=1 // pred_check
      _
    $region7: #{_mlp_apply.1} parent=1 // pred_check_branch
      %12 = sbr.rel (0) target = $region9
    $region8: #{_mlp_apply.1} parent=1 // pred_region
      %s14 = ssub.s32 29696, 29696
      %15 = vsyncadd [#allocation3], %s14
      %s16 = sshll.u32 [#allocation2], 4
      %s17 = int_to_ptr.vmem [resolvable:$true] %s16
      %22 = dma.hbm_to_vmem [thread:$0]  %s1, 29696, %s17, [#allocation3], 256, 256, 16
    $region9: #{_mlp_apply.1} parent=1 // pred_fallthru
      _
    // Predicated region
    $region10: #{_mlp_apply.1} parent=1 // pred_check
      _
    $region11: #{_mlp_apply.1} parent=1 // pred_check_branch
      %24 = sbr.rel (0) target = $region13
    $region12: #{_mlp_apply.1} parent=1 // pred_region
      _
    $region13: #{_mlp_apply.1} parent=1 // pred_fallthru
      _
    // Predicated region
    $region14: #{_mlp_apply.1} parent=1 // pred_check
      _
    $region15: #{_mlp_apply.1} parent=1 // pred_check_branch
      %26 = sbr.rel (0) target = $region17
    $region16: #{_mlp_apply.1} parent=1 // pred_region
      %27 = dma.done [#allocation3], 29696
    $region17: #{_mlp_apply.1} parent=1 // pred_fallthru
      _
    %v29 = vld [vmem:[%s0] sm:$0xf]
    %v30 = vld [vmem:[%s0 + $0x4] sm:$0xf]
    %v31 = vld [vmem:[#allocation2] sm:$0xff]
    %v32 = vld [vmem:[#allocation2 + $0x8] sm:$0xff]
    %v33 = vld [vmem:[#allocation2 + $0x10] sm:$0xff]
    %v34 = vld [vmem:[#allocation2 + $0x18] sm:$0xff]
    %v35 = vld [vmem:[#allocation2 + $0x20] sm:$0xff]
    %v36 = vld [vmem:[#allocation2 + $0x28] sm:$0xff]
    %v37 = vld [vmem:[#allocation2 + $0x30] sm:$0xff]
    %v38 = vld [vmem:[#allocation2 + $0x38] sm:$0xff]
    %v39 = vld [vmem:[%s2] ss:$4 sm:$0xf]
    %v41 = vlaneseq
    %v42 = vshrl.u32 %v41, 7
    %v43 = vsub.s32 0, %v42
    %v44 = vrot.slane %v39, %v43
    %v45 = vlaneseq
    %v46 = vshrl.u32 %v45, 7
    %v47 = vsub.s32 1, %v46
    %v48 = vrot.slane %v39, %v47
    %v49 = vlaneseq
    %v50 = vshrl.u32 %v49, 7
    %v51 = vsub.s32 2, %v50
    %v52 = vrot.slane %v39, %v51
    %v53 = vlaneseq
    %v54 = vshrl.u32 %v53, 7
    %v55 = vsub.s32 3, %v54
    %v56 = vrot.slane %v39, %v55
    %v63 = vunpack.c.l.b16 %v29
    %v64 = vunpack.c.l.b16 %v30
    %v65 = vpack.c.b16 %v64, %v63
    %v74 = vunpack.c.l.b16 %v31
    %v75 = vunpack.c.h.b16 %v31
    %v76 = vunpack.c.l.b16 %v32
    %v77 = vunpack.c.h.b16 %v32
    %v78 = vunpack.c.l.b16 %v33
    %v79 = vunpack.c.h.b16 %v33
    %v80 = vunpack.c.l.b16 %v34
    %v81 = vunpack.c.h.b16 %v34
    %v82 = vunpack.c.l.b16 %v35
    %v83 = vunpack.c.h.b16 %v35
    %v84 = vunpack.c.l.b16 %v36
    %v85 = vunpack.c.h.b16 %v36
    %v86 = vunpack.c.l.b16 %v37
    %v87 = vunpack.c.h.b16 %v37
    %v88 = vunpack.c.l.b16 %v38
    %v89 = vunpack.c.h.b16 %v38
    %v90 = vpack.c.b16 %v78, %v74
    %v91 = vpack.c.b16 %v79, %v75
    %v92 = vpack.c.b16 %v80, %v76
    %v93 = vpack.c.b16 %v81, %v77
    %v94 = vpack.c.b16 %v86, %v82
    %v95 = vpack.c.b16 %v87, %v83
    %v96 = vpack.c.b16 %v88, %v84
    %v97 = vpack.c.b16 %v89, %v85
    %vm106 = vcmask 261120
    %v108 = vsel %vm106, %v65, 0
    %110 = vmatprep.subr.bf16.mxu0 %v91
    %111 = vmatpush1.bf16.msra.mxu0 %v90
    %112 = vmatprep.subr.bf16.mxu0 %v95
    %113 = vmatpush1.bf16.msra.mxu0 %v94
    %114 = vmatprep.subr.bf16.mxu0 0
    %115 = vmatpush1.bf16.msra.mxu0 0
    %116 = vmatprep.subr.bf16.mxu0 0
    %117 = vmatpush1.bf16.msra.mxu0 0
    %118 = vmatprep.subr.bf16.mxu0 0
    %119 = vmatpush1.bf16.msra.mxu0 0
    %120 = vmatprep.subr.bf16.mxu0 0
    %121 = vmatpush1.bf16.msra.mxu0 0
    %122 = vmatprep.subr.bf16.mxu0 0
    %123 = vmatpush1.bf16.msra.mxu0 0
    %124 = vmatprep.subr.bf16.mxu0 0
    %125 = vmatpush1.bf16.msra.mxu0 0
    %126 = vmatprep.subr.bf16.mxu0 0
    %127 = vmatpush1.bf16.msra.mxu0 0
    %128 = vmatprep.subr.bf16.mxu0 0
    %129 = vmatpush1.bf16.msra.mxu0 0
    %130 = vmatprep.subr.bf16.mxu0 0
    %131 = vmatpush1.bf16.msra.mxu0 0
    %132 = vmatprep.subr.bf16.mxu0 0
    %133 = vmatpush1.bf16.msra.mxu0 0
    %134 = vmatprep.subr.bf16.mxu0 0
    %135 = vmatpush1.bf16.msra.mxu0 0
    %136 = vmatprep.subr.bf16.mxu0 0
    %137 = vmatpush1.bf16.msra.mxu0 0
    %138 = vmatprep.subr.bf16.mxu0 0
    %139 = vmatpush1.bf16.msra.mxu0 0
    %140 = vmatprep.subr.bf16.mxu0 0
    %141 = vmatpush1.bf16.msra.mxu0 0
    %142 = vmatprep.mubr.bf16.mxu0 0
    %143 = vmatmul.mubr.bf16.gmra.mrb[0].mxu0 %v108
    %v144 = vpop.f32.mrb[0].mxu0
    %v145 = vadd.f32 %v44, %v144
    %v146 = vpop.f32.mrb[0].mxu0
    %v147 = vadd.f32 %v48, %v146
    %v148 = vpop.f32.mrb[0].mxu0
    %v149 = vadd.f32 %v44, %v148
    %v150 = vpop.f32.mrb[0].mxu0
    %v151 = vadd.f32 %v48, %v150
    %152 = vdwg.mxu0
    %153 = vmatprep.subr.bf16.mxu0 %v93
    %154 = vmatpush1.bf16.msra.mxu0 %v92
    %155 = vmatprep.subr.bf16.mxu0 %v97
    %156 = vmatpush1.bf16.msra.mxu0 %v96
    %157 = vmatprep.subr.bf16.mxu0 0
    %158 = vmatpush1.bf16.msra.mxu0 0
    %159 = vmatprep.subr.bf16.mxu0 0
    %160 = vmatpush1.bf16.msra.mxu0 0
    %161 = vmatprep.subr.bf16.mxu0 0
    %162 = vmatpush1.bf16.msra.mxu0 0
    %163 = vmatprep.subr.bf16.mxu0 0
    %164 = vmatpush1.bf16.msra.mxu0 0
    %165 = vmatprep.subr.bf16.mxu0 0
    %166 = vmatpush1.bf16.msra.mxu0 0
    %167 = vmatprep.subr.bf16.mxu0 0
    %168 = vmatpush1.bf16.msra.mxu0 0
    %169 = vmatprep.subr.bf16.mxu0 0
    %170 = vmatpush1.bf16.msra.mxu0 0
    %171 = vmatprep.subr.bf16.mxu0 0
    %172 = vmatpush1.bf16.msra.mxu0 0
    %173 = vmatprep.subr.bf16.mxu0 0
    %174 = vmatpush1.bf16.msra.mxu0 0
    %175 = vmatprep.subr.bf16.mxu0 0
    %176 = vmatpush1.bf16.msra.mxu0 0
    %177 = vmatprep.subr.bf16.mxu0 0
    %178 = vmatpush1.bf16.msra.mxu0 0
    %179 = vmatprep.subr.bf16.mxu0 0
    %180 = vmatpush1.bf16.msra.mxu0 0
    %181 = vmatprep.subr.bf16.mxu0 0
    %182 = vmatpush1.bf16.msra.mxu0 0
    %183 = vmatprep.subr.bf16.mxu0 0
    %184 = vmatpush1.bf16.msra.mxu0 0
    %185 = vmatprep.mubr.bf16.mxu0 0
    %186 = vmatmul.mubr.bf16.gmra.mrb[0].mxu0 %v108
    %v187 = vpop.f32.mrb[0].mxu0
    %v188 = vadd.f32 %v52, %v187
    %v189 = vpop.f32.mrb[0].mxu0
    %v190 = vadd.f32 %v56, %v189
    %v191 = vpop.f32.mrb[0].mxu0
    %v192 = vadd.f32 %v52, %v191
    %v193 = vpop.f32.mrb[0].mxu0
    %v194 = vadd.f32 %v56, %v193
    %195 = vdwg.mxu0
    %vm196 = vcmp.gt.f32.partialorder %v145, 0.0
    %vm197 = vcmp.gt.f32.partialorder %v147, 0.0
    %vm198 = vcmp.gt.f32.partialorder %v188, 0.0
    %vm199 = vcmp.gt.f32.partialorder %v190, 0.0
    %vm200 = vcmp.gt.f32.partialorder %v149, 0.0
    %vm201 = vcmp.gt.f32.partialorder %v151, 0.0
    %vm202 = vcmp.gt.f32.partialorder %v192, 0.0
    %vm203 = vcmp.gt.f32.partialorder %v194, 0.0
    %v204 = vmul.f32 %v145, 1.442695
    %v205 = vpow.pop %v204
    %v206 = vmul.f32 %v147, 1.442695
    %v207 = vpow.pop %v206
    %v208 = vmul.f32 %v188, 1.442695
    %v209 = vpow.pop %v208
    %v210 = vmul.f32 %v190, 1.442695
    %v211 = vpow.pop %v210
    %v212 = vmul.f32 %v149, 1.442695
    %v213 = vpow.pop %v212
    %v214 = vmul.f32 %v151, 1.442695
    %v215 = vpow.pop %v214
    %v216 = vmul.f32 %v192, 1.442695
    %v217 = vpow.pop %v216
    %v218 = vmul.f32 %v194, 1.442695
    %v219 = vpow.pop %v218
    %v220 = vsub.f32 %v205, 1.0
    %v221 = vsub.f32 %v207, 1.0
    %v222 = vsub.f32 %v209, 1.0
    %v223 = vsub.f32 %v211, 1.0
    %v224 = vsub.f32 %v213, 1.0
    %v225 = vsub.f32 %v215, 1.0
    %v226 = vsub.f32 %v217, 1.0
    %v227 = vsub.f32 %v219, 1.0
    %v228 = vsel %vm196, %v145, %v220
    %v229 = vsel %vm197, %v147, %v221
    %v230 = vsel %vm198, %v188, %v222
    %v231 = vsel %vm199, %v190, %v223
    %v232 = vsel %vm200, %v149, %v224
    %v233 = vsel %vm201, %v151, %v225
    %v234 = vsel %vm202, %v192, %v226
    %v235 = vsel %vm203, %v194, %v227
    %v236 = vld [vmem:[#allocation2 + $0x40] sm:$0xff]
    %v237 = vld [vmem:[#allocation2 + $0x50] sm:$0xff]
    %v238 = vld [vmem:[#allocation2 + $0x60] sm:$0xff]
    %v239 = vld [vmem:[#allocation2 + $0x70] sm:$0xff]
    %v240 = vld [vmem:[#allocation2 + $0x80] sm:$0xff]
    %v241 = vld [vmem:[#allocation2 + $0x90] sm:$0xff]
    %v242 = vld [vmem:[#allocation2 + $0xa0] sm:$0xff]
    %v243 = vld [vmem:[#allocation2 + $0xb0] sm:$0xff]
    %v244 = vld [vmem:[#allocation2 + $0xc0] sm:$0xff]
    %v245 = vld [vmem:[#allocation2 + $0xd0] sm:$0xff]
    %v246 = vld [vmem:[#allocation2 + $0xe0] sm:$0xff]
    %v247 = vld [vmem:[#allocation2 + $0xf0] sm:$0xff]
    %v248 = vld [vmem:[#allocation2 + $0x100] sm:$0xff]
    %v249 = vld [vmem:[#allocation2 + $0x110] sm:$0xff]
    %v250 = vld [vmem:[#allocation2 + $0x120] sm:$0xff]
    %v251 = vld [vmem:[#allocation2 + $0x130] sm:$0xff]
    %v252 = vld [vmem:[#allocation2 + $0x140] sm:$0xff]
    %v253 = vld [vmem:[#allocation2 + $0x150] sm:$0xff]
    %v254 = vld [vmem:[#allocation2 + $0x160] sm:$0xff]
    %v255 = vld [vmem:[#allocation2 + $0x170] sm:$0xff]
    %v256 = vld [vmem:[#allocation2 + $0x180] sm:$0xff]
    %v257 = vld [vmem:[#allocation2 + $0x190] sm:$0xff]
    %v258 = vld [vmem:[#allocation2 + $0x1a0] sm:$0xff]
    %v259 = vld [vmem:[#allocation2 + $0x1b0] sm:$0xff]
    %v260 = vld [vmem:[#allocation2 + $0x1c0] sm:$0xff]
    %v261 = vld [vmem:[#allocation2 + $0x1d0] sm:$0xff]
    %v262 = vld [vmem:[#allocation2 + $0x1e0] sm:$0xff]
    %v263 = vld [vmem:[#allocation2 + $0x1f0] sm:$0xff]
    %v264 = vld [vmem:[#allocation2 + $0x200] sm:$0xff]
    %v265 = vld [vmem:[#allocation2 + $0x210] sm:$0xff]
    %v266 = vld [vmem:[#allocation2 + $0x220] sm:$0xff]
    %v267 = vld [vmem:[#allocation2 + $0x230] sm:$0xff]
    %v268 = vld [vmem:[#allocation2 + $0x240] sm:$0xff]
    %v269 = vld [vmem:[#allocation2 + $0x250] sm:$0xff]
    %v270 = vld [vmem:[#allocation2 + $0x260] sm:$0xff]
    %v271 = vld [vmem:[#allocation2 + $0x270] sm:$0xff]
    %v272 = vld [vmem:[#allocation2 + $0x280] sm:$0xff]
    %v273 = vld [vmem:[#allocation2 + $0x290] sm:$0xff]
    %v274 = vld [vmem:[#allocation2 + $0x2a0] sm:$0xff]
    %v275 = vld [vmem:[#allocation2 + $0x2b0] sm:$0xff]
    %v276 = vld [vmem:[#allocation2 + $0x2c0] sm:$0xff]
    %v277 = vld [vmem:[#allocation2 + $0x2d0] sm:$0xff]
    %v278 = vld [vmem:[#allocation2 + $0x2e0] sm:$0xff]
    %v279 = vld [vmem:[#allocation2 + $0x2f0] sm:$0xff]
    %v280 = vld [vmem:[#allocation2 + $0x300] sm:$0xff]
    %v281 = vld [vmem:[#allocation2 + $0x310] sm:$0xff]
    %v282 = vld [vmem:[#allocation2 + $0x320] sm:$0xff]
    %v283 = vld [vmem:[#allocation2 + $0x330] sm:$0xff]
    %v284 = vld [vmem:[#allocation2 + $0x340] sm:$0xff]
    %v285 = vld [vmem:[#allocation2 + $0x350] sm:$0xff]
    %v286 = vld [vmem:[#allocation2 + $0x360] sm:$0xff]
    %v287 = vld [vmem:[#allocation2 + $0x370] sm:$0xff]
    %v288 = vld [vmem:[#allocation2 + $0x380] sm:$0xff]
    %v289 = vld [vmem:[#allocation2 + $0x390] sm:$0xff]
    %v290 = vld [vmem:[#allocation2 + $0x3a0] sm:$0xff]
    %v291 = vld [vmem:[#allocation2 + $0x3b0] sm:$0xff]
    %v292 = vld [vmem:[#allocation2 + $0x3c0] sm:$0xff]
    %v293 = vld [vmem:[#allocation2 + $0x3d0] sm:$0xff]
    %v294 = vld [vmem:[#allocation2 + $0x3e0] sm:$0xff]
    %v295 = vld [vmem:[#allocation2 + $0x3f0] sm:$0xff]
    %v296 = vld [vmem:[#allocation2 + $0x400] sm:$0xff]
    %v297 = vld [vmem:[#allocation2 + $0x410] sm:$0xff]
    %v298 = vld [vmem:[#allocation2 + $0x420] sm:$0xff]
    %v299 = vld [vmem:[#allocation2 + $0x430] sm:$0xff]
    %v300 = vpack.c.bf16 %v232, %v228
    %v301 = vpack.c.bf16 %v233, %v229
    %v302 = vpack.c.bf16 %v234, %v230
    %v303 = vpack.c.bf16 %v235, %v231
    %s304 = scalar_lea.vmem %s2, 1
    %v305 = vld [vmem:[%s304] ss:$4 sm:$0x3]
    %v307 = vlaneseq
    %v308 = vshrl.u32 %v307, 7
    %v309 = vsub.s32 0, %v308
    %v310 = vrot.slane %v305, %v309
    %v311 = vlaneseq
    %v312 = vshrl.u32 %v311, 7
    %v313 = vsub.s32 1, %v312
    %v314 = vrot.slane %v305, %v313
    %v381 = vunpack.c.l.b16 %v236
    %v382 = vunpack.c.h.b16 %v236
    %v383 = vunpack.c.l.b16 %v237
    %v384 = vunpack.c.h.b16 %v237
    %v385 = vunpack.c.l.b16 %v238
    %v386 = vunpack.c.h.b16 %v238
    %v387 = vunpack.c.l.b16 %v239
    %v388 = vunpack.c.h.b16 %v239
    %v389 = vunpack.c.l.b16 %v240
    %v390 = vunpack.c.h.b16 %v240
    %v391 = vunpack.c.l.b16 %v241
    %v392 = vunpack.c.h.b16 %v241
    %v393 = vunpack.c.l.b16 %v242
    %v394 = vunpack.c.h.b16 %v242
    %v395 = vunpack.c.l.b16 %v243
    %v396 = vunpack.c.h.b16 %v243
    %v397 = vunpack.c.l.b16 %v244
    %v398 = vunpack.c.h.b16 %v244
    %v399 = vunpack.c.l.b16 %v245
    %v400 = vunpack.c.h.b16 %v245
    %v401 = vunpack.c.l.b16 %v246
    %v402 = vunpack.c.h.b16 %v246
    %v403 = vunpack.c.l.b16 %v247
    %v404 = vunpack.c.h.b16 %v247
    %v405 = vunpack.c.l.b16 %v248
    %v406 = vunpack.c.h.b16 %v248
    %v407 = vunpack.c.l.b16 %v249
    %v408 = vunpack.c.h.b16 %v249
    %v409 = vunpack.c.l.b16 %v250
    %v410 = vunpack.c.h.b16 %v250
    %v411 = vunpack.c.l.b16 %v251
    %v412 = vunpack.c.h.b16 %v251
    %v413 = vunpack.c.l.b16 %v252
    %v414 = vunpack.c.h.b16 %v252
    %v415 = vunpack.c.l.b16 %v253
    %v416 = vunpack.c.h.b16 %v253
    %v417 = vunpack.c.l.b16 %v254
    %v418 = vunpack.c.h.b16 %v254
    %v419 = vunpack.c.l.b16 %v255
    %v420 = vunpack.c.h.b16 %v255
    %v421 = vunpack.c.l.b16 %v256
    %v422 = vunpack.c.h.b16 %v256
    %v423 = vunpack.c.l.b16 %v257
    %v424 = vunpack.c.h.b16 %v257
    %v425 = vunpack.c.l.b16 %v258
    %v426 = vunpack.c.h.b16 %v258
    %v427 = vunpack.c.l.b16 %v259
    %v428 = vunpack.c.h.b16 %v259
    %v429 = vunpack.c.l.b16 %v260
    %v430 = vunpack.c.h.b16 %v260
    %v431 = vunpack.c.l.b16 %v261
    %v432 = vunpack.c.h.b16 %v261
    %v433 = vunpack.c.l.b16 %v262
    %v434 = vunpack.c.h.b16 %v262
    %v435 = vunpack.c.l.b16 %v263
    %v436 = vunpack.c.h.b16 %v263
    %v437 = vunpack.c.l.b16 %v264
    %v438 = vunpack.c.h.b16 %v264
    %v439 = vunpack.c.l.b16 %v265
    %v440 = vunpack.c.h.b16 %v265
    %v441 = vunpack.c.l.b16 %v266
    %v442 = vunpack.c.h.b16 %v266
    %v443 = vunpack.c.l.b16 %v267
    %v444 = vunpack.c.h.b16 %v267
    %v445 = vunpack.c.l.b16 %v268
    %v446 = vunpack.c.h.b16 %v268
    %v447 = vunpack.c.l.b16 %v269
    %v448 = vunpack.c.h.b16 %v269
    %v449 = vunpack.c.l.b16 %v270
    %v450 = vunpack.c.h.b16 %v270
    %v451 = vunpack.c.l.b16 %v271
    %v452 = vunpack.c.h.b16 %v271
    %v453 = vunpack.c.l.b16 %v272
    %v454 = vunpack.c.h.b16 %v272
    %v455 = vunpack.c.l.b16 %v273
    %v456 = vunpack.c.h.b16 %v273
    %v457 = vunpack.c.l.b16 %v274
    %v458 = vunpack.c.h.b16 %v274
    %v459 = vunpack.c.l.b16 %v275
    %v460 = vunpack.c.h.b16 %v275
    %v461 = vunpack.c.l.b16 %v276
    %v462 = vunpack.c.h.b16 %v276
    %v463 = vunpack.c.l.b16 %v277
    %v464 = vunpack.c.h.b16 %v277
    %v465 = vunpack.c.l.b16 %v278
    %v466 = vunpack.c.h.b16 %v278
    %v467 = vunpack.c.l.b16 %v279
    %v468 = vunpack.c.h.b16 %v279
    %v469 = vunpack.c.l.b16 %v280
    %v470 = vunpack.c.h.b16 %v280
    %v471 = vunpack.c.l.b16 %v281
    %v472 = vunpack.c.h.b16 %v281
    %v473 = vunpack.c.l.b16 %v282
    %v474 = vunpack.c.h.b16 %v282
    %v475 = vunpack.c.l.b16 %v283
    %v476 = vunpack.c.h.b16 %v283
    %v477 = vunpack.c.l.b16 %v284
    %v478 = vunpack.c.h.b16 %v284
    %v479 = vunpack.c.l.b16 %v285
    %v480 = vunpack.c.h.b16 %v285
    %v481 = vunpack.c.l.b16 %v286
    %v482 = vunpack.c.h.b16 %v286
    %v483 = vunpack.c.l.b16 %v287
    %v484 = vunpack.c.h.b16 %v287
    %v485 = vunpack.c.l.b16 %v288
    %v486 = vunpack.c.h.b16 %v288
    %v487 = vunpack.c.l.b16 %v289
    %v488 = vunpack.c.h.b16 %v289
    %v489 = vunpack.c.l.b16 %v290
    %v490 = vunpack.c.h.b16 %v290
    %v491 = vunpack.c.l.b16 %v291
    %v492 = vunpack.c.h.b16 %v291
    %v493 = vunpack.c.l.b16 %v292
    %v494 = vunpack.c.h.b16 %v292
    %v495 = vunpack.c.l.b16 %v293
    %v496 = vunpack.c.h.b16 %v293
    %v497 = vunpack.c.l.b16 %v294
    %v498 = vunpack.c.h.b16 %v294
    %v499 = vunpack.c.l.b16 %v295
    %v500 = vunpack.c.h.b16 %v295
    %v501 = vunpack.c.l.b16 %v296
    %v502 = vunpack.c.h.b16 %v296
    %v503 = vunpack.c.l.b16 %v297
    %v504 = vunpack.c.h.b16 %v297
    %v505 = vunpack.c.l.b16 %v298
    %v506 = vunpack.c.h.b16 %v298
    %v507 = vunpack.c.l.b16 %v299
    %v508 = vunpack.c.h.b16 %v299
    %v509 = vpack.c.b16 %v383, %v381
    %v510 = vpack.c.b16 %v384, %v382
    %v511 = vpack.c.b16 %v387, %v385
    %v512 = vpack.c.b16 %v388, %v386
    %v513 = vpack.c.b16 %v391, %v389
    %v514 = vpack.c.b16 %v392, %v390
    %v515 = vpack.c.b16 %v395, %v393
    %v516 = vpack.c.b16 %v396, %v394
    %v517 = vpack.c.b16 %v399, %v397
    %v518 = vpack.c.b16 %v400, %v398
    %v519 = vpack.c.b16 %v403, %v401
    %v520 = vpack.c.b16 %v404, %v402
    %v521 = vpack.c.b16 %v407, %v405
    %v522 = vpack.c.b16 %v408, %v406
    %v523 = vpack.c.b16 %v411, %v409
    %v524 = vpack.c.b16 %v412, %v410
    %v525 = vpack.c.b16 %v415, %v413
    %v526 = vpack.c.b16 %v416, %v414
    %v527 = vpack.c.b16 %v419, %v417
    %v528 = vpack.c.b16 %v420, %v418
    %v529 = vpack.c.b16 %v423, %v421
    %v530 = vpack.c.b16 %v424, %v422
    %v531 = vpack.c.b16 %v427, %v425
    %v532 = vpack.c.b16 %v428, %v426
    %v533 = vpack.c.b16 %v431, %v429
    %v534 = vpack.c.b16 %v432, %v430
    %v535 = vpack.c.b16 %v435, %v433
    %v536 = vpack.c.b16 %v436, %v434
    %v537 = vpack.c.b16 %v439, %v437
    %v538 = vpack.c.b16 %v440, %v438
    %v539 = vpack.c.b16 %v443, %v441
    %v540 = vpack.c.b16 %v444, %v442
    %v541 = vpack.c.b16 %v447, %v445
    %v542 = vpack.c.b16 %v448, %v446
    %v543 = vpack.c.b16 %v451, %v449
    %v544 = vpack.c.b16 %v452, %v450
    %v545 = vpack.c.b16 %v455, %v453
    %v546 = vpack.c.b16 %v456, %v454
    %v547 = vpack.c.b16 %v459, %v457
    %v548 = vpack.c.b16 %v460, %v458
    %v549 = vpack.c.b16 %v463, %v461
    %v550 = vpack.c.b16 %v464, %v462
    %v551 = vpack.c.b16 %v467, %v465
    %v552 = vpack.c.b16 %v468, %v466
    %v553 = vpack.c.b16 %v471, %v469
    %v554 = vpack.c.b16 %v472, %v470
    %v555 = vpack.c.b16 %v475, %v473
    %v556 = vpack.c.b16 %v476, %v474
    %v557 = vpack.c.b16 %v479, %v477
    %v558 = vpack.c.b16 %v480, %v478
    %v559 = vpack.c.b16 %v483, %v481
    %v560 = vpack.c.b16 %v484, %v482
    %v561 = vpack.c.b16 %v487, %v485
    %v562 = vpack.c.b16 %v488, %v486
    %v563 = vpack.c.b16 %v491, %v489
    %v564 = vpack.c.b16 %v492, %v490
    %v565 = vpack.c.b16 %v495, %v493
    %v566 = vpack.c.b16 %v496, %v494
    %v567 = vpack.c.b16 %v499, %v497
    %v568 = vpack.c.b16 %v500, %v498
    %v569 = vpack.c.b16 %v503, %v501
    %v570 = vpack.c.b16 %v504, %v502
    %v571 = vpack.c.b16 %v507, %v505
    %v572 = vpack.c.b16 %v508, %v506
    %637 = vmatprep.subr.bf16.mxu0 %v510
    %638 = vmatpush1.bf16.msra.mxu0 %v509
    %639 = vmatprep.subr.bf16.mxu0 %v512
    %640 = vmatpush1.bf16.msra.mxu0 %v511
    %641 = vmatprep.subr.bf16.mxu0 %v514
    %642 = vmatpush1.bf16.msra.mxu0 %v513
    %643 = vmatprep.subr.bf16.mxu0 %v516
    %644 = vmatpush1.bf16.msra.mxu0 %v515
    %645 = vmatprep.subr.bf16.mxu0 %v518
    %646 = vmatpush1.bf16.msra.mxu0 %v517
    %647 = vmatprep.subr.bf16.mxu0 %v520
    %648 = vmatpush1.bf16.msra.mxu0 %v519
    %649 = vmatprep.subr.bf16.mxu0 %v522
    %650 = vmatpush1.bf16.msra.mxu0 %v521
    %651 = vmatprep.subr.bf16.mxu0 %v524
    %652 = vmatpush1.bf16.msra.mxu0 %v523
    %653 = vmatprep.subr.bf16.mxu0 %v526
    %654 = vmatpush1.bf16.msra.mxu0 %v525
    %655 = vmatprep.subr.bf16.mxu0 %v528
    %656 = vmatpush1.bf16.msra.mxu0 %v527
    %657 = vmatprep.subr.bf16.mxu0 %v530
    %658 = vmatpush1.bf16.msra.mxu0 %v529
    %659 = vmatprep.subr.bf16.mxu0 %v532
    %660 = vmatpush1.bf16.msra.mxu0 %v531
    %661 = vmatprep.subr.bf16.mxu0 %v534
    %662 = vmatpush1.bf16.msra.mxu0 %v533
    %663 = vmatprep.subr.bf16.mxu0 %v536
    %664 = vmatpush1.bf16.msra.mxu0 %v535
    %665 = vmatprep.subr.bf16.mxu0 %v538
    %666 = vmatpush1.bf16.msra.mxu0 %v537
    %667 = vmatprep.subr.bf16.mxu0 %v540
    %668 = vmatpush1.bf16.msra.mxu0 %v539
    %669 = vmatprep.mubr.bf16.mxu0 %v301
    %670 = vmatmul.mubr.bf16.gmra.mrb[0].mxu0 %v300
    %v671 = vpop.f32.mrb[0].mxu0
    %v672 = vadd.f32 %v310, %v671
    %v673 = vpop.f32.mrb[0].mxu0
    %v674 = vadd.f32 %v314, %v673
    %v675 = vpop.f32.mrb[0].mxu0
    %v676 = vadd.f32 %v310, %v675
    %v677 = vpop.f32.mrb[0].mxu0
    %v678 = vadd.f32 %v314, %v677
    %679 = vdwg.mxu0
    %680 = vmatprep.subr.bf16.mxu0 %v542
    %681 = vmatpush1.bf16.msra.mxu0 %v541
    %682 = vmatprep.subr.bf16.mxu0 %v544
    %683 = vmatpush1.bf16.msra.mxu0 %v543
    %684 = vmatprep.subr.bf16.mxu0 %v546
    %685 = vmatpush1.bf16.msra.mxu0 %v545
    %686 = vmatprep.subr.bf16.mxu0 %v548
    %687 = vmatpush1.bf16.msra.mxu0 %v547
    %688 = vmatprep.subr.bf16.mxu0 %v550
    %689 = vmatpush1.bf16.msra.mxu0 %v549
    %690 = vmatprep.subr.bf16.mxu0 %v552
    %691 = vmatpush1.bf16.msra.mxu0 %v551
    %692 = vmatprep.subr.bf16.mxu0 %v554
    %693 = vmatpush1.bf16.msra.mxu0 %v553
    %694 = vmatprep.subr.bf16.mxu0 %v556
    %695 = vmatpush1.bf16.msra.mxu0 %v555
    %696 = vmatprep.subr.bf16.mxu0 %v558
    %697 = vmatpush1.bf16.msra.mxu0 %v557
    %698 = vmatprep.subr.bf16.mxu0 %v560
    %699 = vmatpush1.bf16.msra.mxu0 %v559
    %700 = vmatprep.subr.bf16.mxu0 %v562
    %701 = vmatpush1.bf16.msra.mxu0 %v561
    %702 = vmatprep.subr.bf16.mxu0 %v564
    %703 = vmatpush1.bf16.msra.mxu0 %v563
    %704 = vmatprep.subr.bf16.mxu0 %v566
    %705 = vmatpush1.bf16.msra.mxu0 %v565
    %706 = vmatprep.subr.bf16.mxu0 %v568
    %707 = vmatpush1.bf16.msra.mxu0 %v567
    %708 = vmatprep.subr.bf16.mxu0 %v570
    %709 = vmatpush1.bf16.msra.mxu0 %v569
    %710 = vmatprep.subr.bf16.mxu0 %v572
    %711 = vmatpush1.bf16.msra.mxu0 %v571
    %712 = vmatprep.mubr.bf16.mxu0 %v303
    %713 = vmatmul.mubr.bf16.gmra.mrb[0].mxu0 %v302
    %v714 = vpop.f32.mrb[0].mxu0
    %v715 = vadd.f32 %v672, %v714
    %v716 = vpop.f32.mrb[0].mxu0
    %v717 = vadd.f32 %v674, %v716
    %v718 = vpop.f32.mrb[0].mxu0
    %v719 = vadd.f32 %v676, %v718
    %v720 = vpop.f32.mrb[0].mxu0
    %v721 = vadd.f32 %v678, %v720
    %722 = vdwg.mxu0
    %vm723 = vcmp.gt.f32.partialorder %v715, 0.0
    %vm724 = vcmp.gt.f32.partialorder %v717, 0.0
    %vm725 = vcmp.gt.f32.partialorder %v719, 0.0
    %vm726 = vcmp.gt.f32.partialorder %v721, 0.0
    %v727 = vmul.f32 %v715, 1.442695
    %v728 = vpow.pop %v727
    %v729 = vmul.f32 %v717, 1.442695
    %v730 = vpow.pop %v729
    %v731 = vmul.f32 %v719, 1.442695
    %v732 = vpow.pop %v731
    %v733 = vmul.f32 %v721, 1.442695
    %v734 = vpow.pop %v733
    %v735 = vsub.f32 %v728, 1.0
    %v736 = vsub.f32 %v730, 1.0
    %v737 = vsub.f32 %v732, 1.0
    %v738 = vsub.f32 %v734, 1.0
    %v739 = vsel %vm723, %v715, %v735
    %v740 = vsel %vm724, %v717, %v736
    %v741 = vsel %vm725, %v719, %v737
    %v742 = vsel %vm726, %v721, %v738
    %v743 = vld [vmem:[#allocation2 + $0x440] sm:$0xf]
    %v744 = vld [vmem:[#allocation2 + $0x450] sm:$0xf]
    %v745 = vld [vmem:[#allocation2 + $0x460] sm:$0xf]
    %v746 = vld [vmem:[#allocation2 + $0x470] sm:$0xf]
    %v747 = vld [vmem:[#allocation2 + $0x480] sm:$0xf]
    %v748 = vld [vmem:[#allocation2 + $0x490] sm:$0xf]
    %v749 = vld [vmem:[#allocation2 + $0x4a0] sm:$0xf]
    %v750 = vld [vmem:[#allocation2 + $0x4b0] sm:$0xf]
    %v751 = vld [vmem:[#allocation2 + $0x4c0] sm:$0xf]
    %v752 = vld [vmem:[#allocation2 + $0x4d0] sm:$0xf]
    %v753 = vld [vmem:[#allocation2 + $0x4e0] sm:$0xf]
    %v754 = vld [vmem:[#allocation2 + $0x4f0] sm:$0xf]
    %v755 = vld [vmem:[#allocation2 + $0x500] sm:$0xf]
    %v756 = vld [vmem:[#allocation2 + $0x510] sm:$0xf]
    %v757 = vld [vmem:[#allocation2 + $0x520] sm:$0xf]
    %v758 = vld [vmem:[#allocation2 + $0x530] sm:$0xf]
    %v759 = vld [vmem:[#allocation2 + $0x540] sm:$0xf]
    %v760 = vld [vmem:[#allocation2 + $0x550] sm:$0xf]
    %v761 = vld [vmem:[#allocation2 + $0x560] sm:$0xf]
    %v762 = vld [vmem:[#allocation2 + $0x570] sm:$0xf]
    %v763 = vld [vmem:[#allocation2 + $0x580] sm:$0xf]
    %v764 = vld [vmem:[#allocation2 + $0x590] sm:$0xf]
    %v765 = vld [vmem:[#allocation2 + $0x5a0] sm:$0xf]
    %v766 = vld [vmem:[#allocation2 + $0x5b0] sm:$0xf]
    %v767 = vld [vmem:[#allocation2 + $0x5c0] sm:$0xf]
    %v768 = vld [vmem:[#allocation2 + $0x5d0] sm:$0xf]
    %v769 = vld [vmem:[#allocation2 + $0x5e0] sm:$0xf]
    %v770 = vld [vmem:[#allocation2 + $0x5f0] sm:$0xf]
    %v771 = vld [vmem:[#allocation2 + $0x600] sm:$0xf]
    %v772 = vld [vmem:[#allocation2 + $0x610] sm:$0xf]
    %v773 = vld [vmem:[#allocation2 + $0x620] sm:$0xf]
    %v774 = vld [vmem:[#allocation2 + $0x630] sm:$0xf]
    %v775 = vpack.c.bf16 %v741, %v739
    %v776 = vpack.c.bf16 %v742, %v740
    %v777 = vld [vmem:[%s2 + $0x2] sm:$0x1]
    %v778 = vlaneseq
    %v779 = vshrl.u32 %v778, 7
    %v780 = vsub.s32 0, %v779
    %v781 = vrot.slane %v777, %v780
    %v814 = vunpack.c.l.b16 %v743
    %v815 = vunpack.c.l.b16 %v744
    %v816 = vunpack.c.l.b16 %v745
    %v817 = vunpack.c.l.b16 %v746
    %v818 = vunpack.c.l.b16 %v747
    %v819 = vunpack.c.l.b16 %v748
    %v820 = vunpack.c.l.b16 %v749
    %v821 = vunpack.c.l.b16 %v750
    %v822 = vunpack.c.l.b16 %v751
    %v823 = vunpack.c.l.b16 %v752
    %v824 = vunpack.c.l.b16 %v753
    %v825 = vunpack.c.l.b16 %v754
    %v826 = vunpack.c.l.b16 %v755
    %v827 = vunpack.c.l.b16 %v756
    %v828 = vunpack.c.l.b16 %v757
    %v829 = vunpack.c.l.b16 %v758
    %v830 = vunpack.c.l.b16 %v759
    %v831 = vunpack.c.l.b16 %v760
    %v832 = vunpack.c.l.b16 %v761
    %v833 = vunpack.c.l.b16 %v762
    %v834 = vunpack.c.l.b16 %v763
    %v835 = vunpack.c.l.b16 %v764
    %v836 = vunpack.c.l.b16 %v765
    %v837 = vunpack.c.l.b16 %v766
    %v838 = vunpack.c.l.b16 %v767
    %v839 = vunpack.c.l.b16 %v768
    %v840 = vunpack.c.l.b16 %v769
    %v841 = vunpack.c.l.b16 %v770
    %v842 = vunpack.c.l.b16 %v771
    %v843 = vunpack.c.l.b16 %v772
    %v844 = vunpack.c.l.b16 %v773
    %v845 = vunpack.c.l.b16 %v774
    %v846 = vpack.c.b16 %v815, %v814
    %v847 = vpack.c.b16 %v817, %v816
    %v848 = vpack.c.b16 %v819, %v818
    %v849 = vpack.c.b16 %v821, %v820
    %v850 = vpack.c.b16 %v823, %v822
    %v851 = vpack.c.b16 %v825, %v824
    %v852 = vpack.c.b16 %v827, %v826
    %v853 = vpack.c.b16 %v829, %v828
    %v854 = vpack.c.b16 %v831, %v830
    %v855 = vpack.c.b16 %v833, %v832
    %v856 = vpack.c.b16 %v835, %v834
    %v857 = vpack.c.b16 %v837, %v836
    %v858 = vpack.c.b16 %v839, %v838
    %v859 = vpack.c.b16 %v841, %v840
    %v860 = vpack.c.b16 %v843, %v842
    %v861 = vpack.c.b16 %v845, %v844
    %878 = vmatprep.subr.bf16.mxu0 0
    %879 = vmatpush1.bf16.msra.mxu0 %v846
    %880 = vmatprep.subr.bf16.mxu0 0
    %881 = vmatpush1.bf16.msra.mxu0 %v847
    %882 = vmatprep.subr.bf16.mxu0 0
    %883 = vmatpush1.bf16.msra.mxu0 %v848
    %884 = vmatprep.subr.bf16.mxu0 0
    %885 = vmatpush1.bf16.msra.mxu0 %v849
    %886 = vmatprep.subr.bf16.mxu0 0
    %887 = vmatpush1.bf16.msra.mxu0 %v850
    %888 = vmatprep.subr.bf16.mxu0 0
    %889 = vmatpush1.bf16.msra.mxu0 %v851
    %890 = vmatprep.subr.bf16.mxu0 0
    %891 = vmatpush1.bf16.msra.mxu0 %v852
    %892 = vmatprep.subr.bf16.mxu0 0
    %893 = vmatpush1.bf16.msra.mxu0 %v853
    %894 = vmatprep.subr.bf16.mxu0 0
    %895 = vmatpush1.bf16.msra.mxu0 %v854
    %896 = vmatprep.subr.bf16.mxu0 0
    %897 = vmatpush1.bf16.msra.mxu0 %v855
    %898 = vmatprep.subr.bf16.mxu0 0
    %899 = vmatpush1.bf16.msra.mxu0 %v856
    %900 = vmatprep.subr.bf16.mxu0 0
    %901 = vmatpush1.bf16.msra.mxu0 %v857
    %902 = vmatprep.subr.bf16.mxu0 0
    %903 = vmatpush1.bf16.msra.mxu0 %v858
    %904 = vmatprep.subr.bf16.mxu0 0
    %905 = vmatpush1.bf16.msra.mxu0 %v859
    %906 = vmatprep.subr.bf16.mxu0 0
    %907 = vmatpush1.bf16.msra.mxu0 %v860
    %908 = vmatprep.subr.bf16.mxu0 0
    %909 = vmatpush1.bf16.msra.mxu0 %v861
    %910 = vmatprep.mubr.bf16.mxu0 %v776
    %911 = vmatmul.mubr.bf16.gmra.mrb[0].mxu0 %v775
    %v912 = vpop.f32.mrb[0].mxu0
    %v913 = vadd.f32 %v781, %v912
    %v914 = vpop.f32.mrb[0].mxu0
    %v915 = vpop.f32.mrb[0].mxu0
    %v916 = vadd.f32 %v781, %v915
    %v917 = vpop.f32.mrb[0].mxu0
    %918 = vdwg.mxu0
    %vm919 = vcmp.gt.f32.partialorder %v913, 0.0
    %vm920 = vcmp.gt.f32.partialorder %v916, 0.0
    %v921 = vmul.f32 %v913, 1.442695
    %v922 = vpow.pop %v921
    %v923 = vmul.f32 %v916, 1.442695
    %v924 = vpow.pop %v923
    %v925 = vsub.f32 %v922, 1.0
    %v926 = vsub.f32 %v924, 1.0
    %v927 = vsel %vm919, %v913, %v925
    %v928 = vsel %vm920, %v916, %v926
    %v929 = vld [vmem:[#allocation2 + $0x640] sm:$0xf]
    %v930 = vld [vmem:[#allocation2 + $0x650] sm:$0xf]
    %v931 = vld [vmem:[#allocation2 + $0x660] sm:$0xf]
    %v932 = vld [vmem:[#allocation2 + $0x670] sm:$0xf]
    %v933 = vld [vmem:[#allocation2 + $0x680] sm:$0xf]
    %v934 = vld [vmem:[#allocation2 + $0x690] sm:$0xf]
    %v935 = vld [vmem:[#allocation2 + $0x6a0] sm:$0xf]
    %v936 = vld [vmem:[#allocation2 + $0x6b0] sm:$0xf]
    %v937 = vld [vmem:[#allocation2 + $0x6c0] sm:$0xf]
    %v938 = vld [vmem:[#allocation2 + $0x6d0] sm:$0xf]
    %v939 = vld [vmem:[#allocation2 + $0x6e0] sm:$0xf]
    %v940 = vld [vmem:[#allocation2 + $0x6f0] sm:$0xf]
    %v941 = vld [vmem:[#allocation2 + $0x700] sm:$0xf]
    %v942 = vld [vmem:[#allocation2 + $0x710] sm:$0xf]
    %v943 = vld [vmem:[#allocation2 + $0x720] sm:$0xf]
    %v944 = vld [vmem:[#allocation2 + $0x730] sm:$0xf]
    %v945 = vpack.c.bf16 %v928, %v927
    %v946 = vld [vmem:[%s2 + $0x3] sm:$0x1]
    %v947 = vlaneseq
    %v948 = vshrl.u32 %v947, 7
    %v949 = vsub.s32 0, %v948
    %v950 = vrot.slane %v946, %v949
    %v967 = vunpack.c.l.b16 %v929
    %v968 = vunpack.c.l.b16 %v930
    %v969 = vunpack.c.l.b16 %v931
    %v970 = vunpack.c.l.b16 %v932
    %v971 = vunpack.c.l.b16 %v933
    %v972 = vunpack.c.l.b16 %v934
    %v973 = vunpack.c.l.b16 %v935
    %v974 = vunpack.c.l.b16 %v936
    %v975 = vunpack.c.l.b16 %v937
    %v976 = vunpack.c.l.b16 %v938
    %v977 = vunpack.c.l.b16 %v939
    %v978 = vunpack.c.l.b16 %v940
    %v979 = vunpack.c.l.b16 %v941
    %v980 = vunpack.c.l.b16 %v942
    %v981 = vunpack.c.l.b16 %v943
    %v982 = vunpack.c.l.b16 %v944
    %v983 = vpack.c.b16 %v968, %v967
    %v984 = vpack.c.b16 %v970, %v969
    %v985 = vpack.c.b16 %v972, %v971
    %v986 = vpack.c.b16 %v974, %v973
    %v987 = vpack.c.b16 %v976, %v975
    %v988 = vpack.c.b16 %v978, %v977
    %v989 = vpack.c.b16 %v980, %v979
    %v990 = vpack.c.b16 %v982, %v981
    %999 = vmatprep.subr.bf16.mxu0 0
    %1000 = vmatpush1.bf16.msra.mxu0 %v983
    %1001 = vmatprep.subr.bf16.mxu0 0
    %1002 = vmatpush1.bf16.msra.mxu0 %v984
    %1003 = vmatprep.subr.bf16.mxu0 0
    %1004 = vmatpush1.bf16.msra.mxu0 %v985
    %1005 = vmatprep.subr.bf16.mxu0 0
    %1006 = vmatpush1.bf16.msra.mxu0 %v986
    %1007 = vmatprep.subr.bf16.mxu0 0
    %1008 = vmatpush1.bf16.msra.mxu0 %v987
    %1009 = vmatprep.subr.bf16.mxu0 0
    %1010 = vmatpush1.bf16.msra.mxu0 %v988
    %1011 = vmatprep.subr.bf16.mxu0 0
    %1012 = vmatpush1.bf16.msra.mxu0 %v989
    %1013 = vmatprep.subr.bf16.mxu0 0
    %1014 = vmatpush1.bf16.msra.mxu0 %v990
    %1015 = vmatprep.subr.bf16.mxu0 0
    %1016 = vmatpush1.bf16.msra.mxu0 0
    %1017 = vmatprep.subr.bf16.mxu0 0
    %1018 = vmatpush1.bf16.msra.mxu0 0
    %1019 = vmatprep.subr.bf16.mxu0 0
    %1020 = vmatpush1.bf16.msra.mxu0 0
    %1021 = vmatprep.subr.bf16.mxu0 0
    %1022 = vmatpush1.bf16.msra.mxu0 0
    %1023 = vmatprep.subr.bf16.mxu0 0
    %1024 = vmatpush1.bf16.msra.mxu0 0
    %1025 = vmatprep.subr.bf16.mxu0 0
    %1026 = vmatpush1.bf16.msra.mxu0 0
    %1027 = vmatprep.subr.bf16.mxu0 0
    %1028 = vmatpush1.bf16.msra.mxu0 0
    %1029 = vmatprep.subr.bf16.mxu0 0
    %1030 = vmatpush1.bf16.msra.mxu0 0
    %1031 = vmatprep.mubr.bf16.mxu0 0
    %1032 = vmatmul.mubr.bf16.gmra.mrb[0].mxu0 %v945
    %v1033 = vpop.f32.mrb[0].mxu0
    %v1034 = vadd.f32 %v950, %v1033
    %v1035 = vpop.f32.mrb[0].mxu0
    %v1036 = vpop.f32.mrb[0].mxu0
    %v1037 = vadd.f32 %v950, %v1036
    %v1038 = vpop.f32.mrb[0].mxu0
    %1039 = vdwg.mxu0
    %1040 = vst [vmem:[%s3] sm:$0xff] %v1034
    %1041 = vst [vmem:[%s3 + $0x8] sm:$0xff] %v1037
    // Predicated region
    $region18: #{_mlp_apply.1} parent=1 // pred_check
      _
    $region19: #{_mlp_apply.1} parent=1 // pred_check_branch
      %1043 = sbr.rel (0) target = $region21
    $region20: #{_mlp_apply.1} parent=1 // pred_region
      _
    $region21: #{_mlp_apply.1} parent=1 // pred_fallthru
      _
    // Predicated region
    $region22: #{_mlp_apply.1} parent=1 // pred_check
      _
    $region23: #{_mlp_apply.1} parent=1 // pred_check_branch
      %1045 = sbr.rel (0) target = $region25
    $region24: #{_mlp_apply.1} parent=1 // pred_region
      _
    $region25: #{_mlp_apply.1} parent=1 // pred_fallthru
      _
    %1046 = vsyncpa [#allocation3], 1

</llo_original>
